<compile_context>
chip_gen: v5e
topology: v5e:2x2
jax: 0.10.0
libtpu: 0.0.40
codegen_flags: <defaults>
</compile_context>

<pallas_src>
import functools

import jax
import jax.numpy as jnp
from jax.experimental import pallas as pl
from jax.experimental.pallas import tpu as pltpu


# -----------------------------------------------------------------------------
# helpers
# -----------------------------------------------------------------------------
def _round_up(x, m):
    return (x + m - 1) // m * m


def _pick_divisor(n, cap):
    d = max(1, min(n, cap))
    while n % d:
        d -= 1
    return d


def _pad_to(a, shape):
    pads = tuple((0, t - s) for s, t in zip(a.shape, shape))
    if all(p == (0, 0) for p in pads):
        return a
    return jnp.pad(a, pads)


def _pick_row_tile(M, cap):
    """Row (sublane) tile: multiple of 8, bounded padding waste, >=2 blocks if easy."""
    Mp8 = _round_up(max(M, 1), 8)
    if Mp8 <= cap:
        units = Mp8 // 8
        if units >= 2:
            tm = 8 * _pick_divisor(units, max(1, units // 2))  # >=2 blocks for v7x 2xTC
        else:
            tm = Mp8
        return tm, Mp8
    tm = cap - cap % 8
    while tm > 8:
        Mp = _round_up(M, tm)
        if Mp - M <= max(8, M // 16):          # <= ~6% padded rows
            return tm, Mp
        tm -= 8
    return 8, Mp8


def _pick_seq_tile(T, cap):
    """Sequence tile for attention: multiple of 8, bounded padding waste."""
    Tp8 = _round_up(max(T, 1), 8)
    if Tp8 <= cap:
        return Tp8, Tp8
    t = cap - cap % 8
    while t > 8:
        Tp = _round_up(T, t)
        if Tp - T <= max(8, T // 16):
            return t, Tp
        t -= 8
    return 8, Tp8


def _mosaic_params(dim_sem, fp_bytes):
    # derive VMEM limit from the actual tile footprint; cap below v7x's 64 MiB phys
    limit = int(min(max(int(fp_bytes) + (4 << 20), 16 << 20), 48 << 20))
    return pltpu.CompilerParams(dimension_semantics=dim_sem,
                                vmem_limit_bytes=limit)


_WRES_VMEM_BUDGET = 44 * 1024 * 1024   # budget for the weight-resident matmul path


# -----------------------------------------------------------------------------
# Pallas kernels
# -----------------------------------------------------------------------------
def _matmul_bias_wres_kernel(x_ref, w_ref, b_ref, *rest, gelu, has_residual):
    """Weight-resident: full (K,N) panel in VMEM, single MXU pass per row tile."""
    if has_residual:
        r_ref, o_ref = rest
    else:
        (o_ref,) = rest
    acc = jnp.dot(x_ref[...], w_ref[...], preferred_element_type=jnp.float32)
    acc = acc + b_ref[...].astype(jnp.float32)
    if gelu:
        # TODO(synk): PyTorch nn.GELU defaults to exact erf GELU; tanh approx here.
        acc = jax.nn.gelu(acc, approximate=True)
    if has_residual:
        acc = acc + r_ref[...].astype(jnp.float32)
    o_ref[...] = acc.astype(o_ref.dtype)


def _matmul_bias_ktiled_kernel(x_ref, w_ref, b_ref, *rest, gelu, has_residual):
    """Fallback: K-tiled with f32 VMEM accumulator (only for huge weight panels)."""
    if has_residual:
        r_ref, o_ref, acc_ref = rest
    else:
        o_ref, acc_ref = rest
    k = pl.program_id(2)

    @pl.when(k == 0)
    def _():
        acc_ref[...] = jnp.zeros_like(acc_ref)

    acc_ref[...] += jnp.dot(x_ref[...], w_ref[...],
                            preferred_element_type=jnp.float32)

    @pl.when(k == pl.num_programs(2) - 1)
    def _():
        acc = acc_ref[...] + b_ref[...].astype(jnp.float32)
        if gelu:
            acc = jax.nn.gelu(acc, approximate=True)
        if has_residual:
            acc = acc + r_ref[...].astype(jnp.float32)
        o_ref[...] = acc.astype(o_ref.dtype)


def matmul_bias(x, w, b, *, gelu=False, residual=None,
                tm=512, tn=512, tk=512, out_dtype=jnp.bfloat16):
    """(M,K)@(K,N) + bias (+GELU) (+residual).  bf16 operands, f32 accumulation.

    Weight-resident (grid over M only, weight panel stays in VMEM) whenever the
    footprint fits; otherwise K-tiled accumulator fallback.
    """
    M, K = x.shape
    Kw, N = w.shape
    assert Kw == K
    if b.ndim == 1:
        b = b.reshape(1, -1)
    has_residual = residual is not None

    tm_, Mp = _pick_row_tile(M, tm)
    xp = _pad_to(x, (Mp, K))
    rp = _pad_to(residual, (Mp, N)) if has_residual else None

    out_bytes = jnp.dtype(out_dtype).itemsize
    w_bytes = K * N * w.dtype.itemsize
    fp_wres = (2 * w_bytes
               + 2 * tm_ * K * xp.dtype.itemsize
               + 2 * tm_ * N * out_bytes
               + (2 * tm_ * N * rp.dtype.itemsize if has_residual else 0)
               + 2 * N * 4)

    if fp_wres <= _WRES_VMEM_BUDGET:
        in_specs = [
            pl.BlockSpec((tm_, K), lambda i: (i, 0)),
            pl.BlockSpec((K, N), lambda i: (0, 0)),     # constant -> resident
            pl.BlockSpec((1, N), lambda i: (0, 0)),
        ]
        args = [xp, w, b]
        if has_residual:
            in_specs.append(pl.BlockSpec((tm_, N), lambda i: (i, 0)))
            args.append(rp)
        out = pl.pallas_call(
            functools.partial(_matmul_bias_wres_kernel, gelu=gelu,
                              has_residual=has_residual),
            out_shape=jax.ShapeDtypeStruct((Mp, N), out_dtype),
            grid_spec=pltpu.PrefetchScalarGridSpec(
                num_scalar_prefetch=0,
                grid=(Mp // tm_,),
                in_specs=in_specs,
                out_specs=pl.BlockSpec((tm_, N), lambda i: (i, 0)),
            ),
            compiler_params=_mosaic_params(("parallel",), fp_wres),
        )(*args)
        return out[:M]

    # ---- fallback: K-tiled accumulator (very large K*N only) -----------------
    Kp = _round_up(K, 128)
    Np = _round_up(N, 128)
    tk_ = 128 * _pick_divisor(Kp // 128, max(1, tk // 128))
    tn_ = 128 * _pick_divisor(Np // 128, max(1, tn // 128))

    xp2 = _pad_to(xp, (Mp, Kp))
    wp = _pad_to(w, (Kp, Np))
    bp = _pad_to(b, (1, Np))
    in_specs = [
        pl.BlockSpec((tm_, tk_), lambda i, j, k: (i, k)),
        pl.BlockSpec((tk_, tn_), lambda i, j, k: (k, j)),
        pl.BlockSpec((1, tn_), lambda i, j, k: (0, j)),
    ]
    args = [xp2, wp, bp]
    if has_residual:
        in_specs.append(pl.BlockSpec((tm_, tn_), lambda i, j, k: (i, j)))
        args.append(_pad_to(rp, (Mp, Np)))
    fp_kt = (2 * tm_ * tk_ * 2 + 2 * tk_ * tn_ * 2 + 2 * tm_ * tn_ * out_bytes
             + (2 * tm_ * tn_ * 2 if has_residual else 0) + tm_ * tn_ * 4)
    out = pl.pallas_call(
        functools.partial(_matmul_bias_ktiled_kernel, gelu=gelu,
                          has_residual=has_residual),
        out_shape=jax.ShapeDtypeStruct((Mp, Np), out_dtype),
        grid_spec=pltpu.PrefetchScalarGridSpec(
            num_scalar_prefetch=0,
            grid=(Mp // tm_, Np // tn_, Kp // tk_),
            in_specs=in_specs,
            out_specs=pl.BlockSpec((tm_, tn_), lambda i, j, k: (i, j)),
            scratch_shapes=[pltpu.VMEM((tm_, tn_), jnp.float32)],
        ),
        compiler_params=_mosaic_params(("parallel", "parallel", "arbitrary"), fp_kt),
    )(*args)
    return out[:M, :N]


def _layernorm_kernel(x_ref, g_ref, b_ref, o_ref, *, eps):
    x = x_ref[...].astype(jnp.float32)
    mean = jnp.mean(x, axis=-1, keepdims=True)
    var = jnp.mean(jnp.square(x - mean), axis=-1, keepdims=True)
    y = (x - mean) * jax.lax.rsqrt(var + eps)
    o_ref[...] = (y * g_ref[...] + b_ref[...]).astype(o_ref.dtype)


def layernorm(x, gamma, beta, *, eps=1e-6, tm=1024, out_dtype=jnp.bfloat16):
    """Row-wise LayerNorm: bf16 in/out, f32 statistics in-kernel."""
    M, D = x.shape
    if gamma.ndim == 1:
        gamma = gamma.reshape(1, -1)
    if beta.ndim == 1:
        beta = beta.reshape(1, -1)
    tm_, Mp = _pick_row_tile(M, tm)
    xp = _pad_to(x, (Mp, D))
    fp = 2 * tm_ * D * (xp.dtype.itemsize + jnp.dtype(out_dtype).itemsize) + 4 * D * 4
    out = pl.pallas_call(
        functools.partial(_layernorm_kernel, eps=eps),
        out_shape=jax.ShapeDtypeStruct((Mp, D), out_dtype),
        grid_spec=pltpu.PrefetchScalarGridSpec(
            num_scalar_prefetch=0,
            grid=(Mp // tm_,),
            in_specs=[
                pl.BlockSpec((tm_, D), lambda i: (i, 0)),
                pl.BlockSpec((1, D), lambda i: (0, 0)),
                pl.BlockSpec((1, D), lambda i: (0, 0)),
            ],
            out_specs=pl.BlockSpec((tm_, D), lambda i: (i, 0)),
        ),
        compiler_params=_mosaic_params(("parallel",), fp),
    )(xp, gamma, beta)
    return out[:M]


def _flash_attn_kernel(q_ref, k_ref, v_ref, o_ref, m_sc, l_sc, acc_sc,
                       *, scale, kv_len, tkv, needs_mask):
    ki = pl.program_id(2)

    @pl.when(ki == 0)
    def _():
        m_sc[...] = jnp.full_like(m_sc, -1e30)
        l_sc[...] = jnp.zeros_like(l_sc)
        acc_sc[...] = jnp.zeros_like(acc_sc)

    q = q_ref[...] * scale                      # fold scale into the small (tq,dh) tile
    s = jnp.einsum("bqd,bkd->bqk", q, k_ref[...],
                   preferred_element_type=jnp.float32)
    if needs_mask:
        # only the final kv tile can contain padded keys; cheap (1,1,tkv) iota
        kv_idx = jax.lax.broadcasted_iota(jnp.int32, (1, 1, s.shape[-1]), 2)
        limit = kv_len - ki * tkv
        s = jnp.where(kv_idx < limit, s, -1e30)

    m_prev = m_sc[...]
    m_new = jnp.maximum(m_prev, jnp.max(s, axis=-1, keepdims=True))
    alpha = jnp.exp(m_prev - m_new)
    p = jnp.exp(s - m_new)
    l_sc[...] = alpha * l_sc[...] + jnp.sum(p, axis=-1, keepdims=True)
    acc_sc[...] = alpha * acc_sc[...] + jnp.einsum(
        "bqk,bkd->bqd", p.astype(v_ref.dtype), v_ref[...],
        preferred_element_type=jnp.float32)
    m_sc[...] = m_new

    @pl.when(ki == pl.num_programs(2) - 1)
    def _():
        o_ref[...] = (acc_sc[...] *
                      pl.reciprocal(l_sc[...], approx=True)).astype(o_ref.dtype)


def flash_attention(q, k, v, *, tq=256, tkv=256, max_bh_tile=8,
                    out_dtype=jnp.bfloat16):
    """q,k,v: (B*H, T, dh) bf16 -> softmax(QK^T/sqrt(dh)) V, flash-style KV tiles."""
    BH, T, dh = q.shape
    scale = 1.0 / (dh ** 0.5)
    tq_, Tq = _pick_seq_tile(T, tq)
    tkv_, Tk = _pick_seq_tile(T, tkv)
    tb = _pick_divisor(BH, max_bh_tile)
    needs_mask = (Tk != T)

    qp = _pad_to(q, (BH, Tq, dh))
    kp = _pad_to(k, (BH, Tk, dh))
    vp = _pad_to(v, (BH, Tk, dh))

    fp = (2 * tb * tq_ * dh * qp.dtype.itemsize
          + 4 * tb * tkv_ * dh * kp.dtype.itemsize
          + 2 * tb * tq_ * dh * jnp.dtype(out_dtype).itemsize
          + tb * tq_ * (dh + 2) * 4)
    out = pl.pallas_call(
        functools.partial(_flash_attn_kernel, scale=scale, kv_len=T, tkv=tkv_,
                          needs_mask=needs_mask),
        out_shape=jax.ShapeDtypeStruct((BH, Tq, dh), out_dtype),
        grid_spec=pltpu.PrefetchScalarGridSpec(
            num_scalar_prefetch=0,
            grid=(BH // tb, Tq // tq_, Tk // tkv_),
            in_specs=[
                pl.BlockSpec((tb, tq_, dh), lambda b, qi, ki: (b, qi, 0)),
                pl.BlockSpec((tb, tkv_, dh), lambda b, qi, ki: (b, ki, 0)),
                pl.BlockSpec((tb, tkv_, dh), lambda b, qi, ki: (b, ki, 0)),
            ],
            out_specs=pl.BlockSpec((tb, tq_, dh), lambda b, qi, ki: (b, qi, 0)),
            scratch_shapes=[
                pltpu.VMEM((tb, tq_, 1), jnp.float32),
                pltpu.VMEM((tb, tq_, 1), jnp.float32),
                pltpu.VMEM((tb, tq_, dh), jnp.float32),
            ],
        ),
        compiler_params=_mosaic_params(("parallel", "parallel", "arbitrary"), fp),
    )(qp, kp, vp)
    return out[:, :T, :]


# -----------------------------------------------------------------------------
# Model: minimal ViT backbone + linear head (MultiCrop forward semantics)
# -----------------------------------------------------------------------------
def init_params(key, *, in_chans, patch, dim, depth, heads, mlp_dim, num_classes,
                n_tokens):
    ks = jax.random.split(key, 4 + depth)
    std = 0.02
    p = {
        "patch_w": std * jax.random.normal(ks[0], (in_chans * patch * patch, dim), jnp.float32),
        "patch_b": jnp.zeros((dim,), jnp.float32),
        "cls": std * jax.random.normal(ks[1], (1, 1, dim), jnp.float32),
        "pos": std * jax.random.normal(ks[2], (1, n_tokens, dim), jnp.float32),
        "norm_g": jnp.ones((dim,), jnp.float32),
        "norm_b": jnp.zeros((dim,), jnp.float32),
        "head_w": std * jax.random.normal(ks[3], (dim, num_classes), jnp.float32),
        "head_b": jnp.zeros((num_classes,), jnp.float32),
        "blocks": [],
    }
    for d in range(depth):
        bk = jax.random.split(ks[4 + d], 4)
        p["blocks"].append({
            "ln1_g": jnp.ones((dim,), jnp.float32), "ln1_b": jnp.zeros((dim,), jnp.float32),
            "qkv_w": std * jax.random.normal(bk[0], (dim, 3 * dim), jnp.float32),
            "qkv_b": jnp.zeros((3 * dim,), jnp.float32),
            "proj_w": std * jax.random.normal(bk[1], (dim, dim), jnp.float32),
            "proj_b": jnp.zeros((dim,), jnp.float32),
            "ln2_g": jnp.ones((dim,), jnp.float32), "ln2_b": jnp.zeros((dim,), jnp.float32),
            "fc1_w": std * jax.random.normal(bk[2], (dim, mlp_dim), jnp.float32),
            "fc1_b": jnp.zeros((mlp_dim,), jnp.float32),
            "fc2_w": std * jax.random.normal(bk[3], (mlp_dim, dim), jnp.float32),
            "fc2_b": jnp.zeros((dim,), jnp.float32),
        })
    return p


def prepare_params(p):
    """One-time weight pre-cast/reshape so the per-layer path has no XLA glue."""
    w = lambda a: a.astype(jnp.bfloat16)
    b = lambda a: a.reshape(1, -1).astype(jnp.float32)
    out = {
        "patch_w": w(p["patch_w"]), "patch_b": b(p["patch_b"]),
        "cls": p["cls"].astype(jnp.bfloat16),
        "pos": p["pos"].astype(jnp.bfloat16),
        "norm_g": b(p["norm_g"]), "norm_b": b(p["norm_b"]),
        "head_w": w(p["head_w"]), "head_b": b(p["head_b"]),
        "blocks": [],
    }
    for blk in p["blocks"]:
        out["blocks"].append({
            "ln1_g": b(blk["ln1_g"]), "ln1_b": b(blk["ln1_b"]),
            "qkv_w": w(blk["qkv_w"]), "qkv_b": b(blk["qkv_b"]),
            "proj_w": w(blk["proj_w"]), "proj_b": b(blk["proj_b"]),
            "ln2_g": b(blk["ln2_g"]), "ln2_b": b(blk["ln2_b"]),
            "fc1_w": w(blk["fc1_w"]), "fc1_b": b(blk["fc1_b"]),
            "fc2_w": w(blk["fc2_w"]), "fc2_b": b(blk["fc2_b"]),
        })
    return out


def patchify_nchw(x, patch):
    """NCHW -> (B, n_patches, C*ph*pw), matching conv(kernel=stride=patch) semantics."""
    B, C, H, W = x.shape
    gh, gw = H // patch, W // patch
    x = x.reshape(B, C, gh, patch, gw, patch)
    x = jnp.transpose(x, (0, 2, 4, 1, 3, 5))       # (B, gh, gw, C, ph, pw)
    return x.reshape(B, gh * gw, C * patch * patch)


def vit_backbone(params, x, *, patch, dim, heads):
    B = x.shape[0]
    tokens = patchify_nchw(x, patch)                             # (B, nP, C*p*p)
    nP = tokens.shape[1]
    emb = matmul_bias(tokens.reshape(B * nP, -1).astype(jnp.bfloat16),
                      params["patch_w"], params["patch_b"])      # Pallas weight-resident
    emb = emb.reshape(B, nP, dim)
    cls = jnp.broadcast_to(params["cls"], (B, 1, dim))
    h = jnp.concatenate([cls, emb], axis=1) + params["pos"]      # (B, T, D) bf16, glue
    T = h.shape[1]
    dh = dim // heads

    for blk in params["blocks"]:
        # --- attention ---
        h_flat = h.reshape(B * T, dim)
        hn = layernorm(h_flat, blk["ln1_g"], blk["ln1_b"])
        qkv = matmul_bias(hn, blk["qkv_w"], blk["qkv_b"])        # (B*T, 3D) bf16
        # TODO(synk): head split/merge transposes remain XLA glue; could be fused
        # into the QKV / proj BlockSpecs to avoid these HBM round trips.
        qkv = qkv.reshape(B, T, 3, heads, dh)
        q = jnp.transpose(qkv[:, :, 0], (0, 2, 1, 3)).reshape(B * heads, T, dh)
        k = jnp.transpose(qkv[:, :, 1], (0, 2, 1, 3)).reshape(B * heads, T, dh)
        v = jnp.transpose(qkv[:, :, 2], (0, 2, 1, 3)).reshape(B * heads, T, dh)
        attn = flash_attention(q, k, v)                          # bf16 flash attention
        attn = jnp.transpose(attn.reshape(B, heads, T, dh),
                             (0, 2, 1, 3)).reshape(B * T, dim)
        # residual add fused into the proj matmul epilogue (bf16 residual, f32 acc)
        h = matmul_bias(attn, blk["proj_w"], blk["proj_b"],
                        residual=h_flat).reshape(B, T, dim)

        # --- MLP ---
        h_flat = h.reshape(B * T, dim)
        hn = layernorm(h_flat, blk["ln2_g"], blk["ln2_b"])
        m = matmul_bias(hn, blk["fc1_w"], blk["fc1_b"], gelu=True)
        h = matmul_bias(m, blk["fc2_w"], blk["fc2_b"],
                        residual=h_flat).reshape(B, T, dim)

    h = layernorm(h.reshape(B * T, dim), params["norm_g"], params["norm_b"])
    h = h.reshape(B, T, dim)
    return h[:, 0, :]                                            # cls embedding (B, D)


def multi_crop_forward(params, crops, *, patch, dim, heads):
    """crops: list of (n_samples, 3, size, size).  Returns tuple of n_crops logit chunks."""
    n_crops = len(crops)
    x = jnp.concatenate(crops, axis=0)                           # torch.cat(x, dim=0)
    cls_embedding = vit_backbone(params, x, patch=patch, dim=dim, heads=heads)
    logits = matmul_bias(cls_embedding, params["head_w"], params["head_b"],
                         out_dtype=jnp.float32)                  # linear head
    return tuple(jnp.split(logits, n_crops, axis=0))             # logits.chunk(n_crops)


# -----------------------------------------------------------------------------
if __name__ == "__main__":
    # small, ViT-consistent shapes
    n_crops = 2
    n_samples = 2
    in_chans = 3
    size = 16
    patch = 8
    dim = 32
    heads = 4
    depth = 2
    mlp_dim = 64
    num_classes = 10
    n_tokens = (size // patch) ** 2 + 1  # patches + cls

    key = jax.random.PRNGKey(0)
    k_params, k_x0, k_x1 = jax.random.split(key, 3)
    raw_params = init_params(k_params, in_chans=in_chans, patch=patch, dim=dim,
                             depth=depth, heads=heads, mlp_dim=mlp_dim,
                             num_classes=num_classes, n_tokens=n_tokens)
    params = prepare_params(raw_params)   # one-time bf16 cast / bias reshape

    crops = [
        jax.random.normal(k_x0, (n_samples, in_chans, size, size), jnp.float32),
        jax.random.normal(k_x1, (n_samples, in_chans, size, size), jnp.float32),
    ]

    chunks = multi_crop_forward(params, crops, patch=patch, dim=dim, heads=heads)
    chunks = jax.block_until_ready(chunks)

    assert len(chunks) == n_crops
    for c in chunks:
        assert c.shape == (n_samples, num_classes)
        assert bool(jnp.all(jnp.isfinite(c)))
    print("KERNEL_OK")
</pallas_src>

<mosaic_0001>
module attributes {stable_mosaic.version = 11 : i64} {
  func.func @_matmul_bias_wres_kernel(%arg0: i32, %arg1: memref<8x192xbf16, #tpu.memory_space<vmem>>, %arg2: memref<192x32xbf16, #tpu.memory_space<vmem>>, %arg3: memref<1x32xf32, #tpu.memory_space<vmem>>, %arg4: memref<8x32xbf16, #tpu.memory_space<vmem>>) attributes {dimension_semantics = [#tpu.dimension_semantics<parallel>], iteration_bounds = array<i64: 2>, scalar_prefetch = 0 : i64, scratch_operands = 0 : i64, tpu.core_type = #tpu.core_type<tc>, window_params = [{transform_indices = @transform_0, window_bounds = array<i64: 8, 192>}, {pipeline_mode = #tpu.pipeline_mode<synchronous>, transform_indices = @transform_1, window_bounds = array<i64: 192, 32>}, {pipeline_mode = #tpu.pipeline_mode<synchronous>, transform_indices = @transform_2, window_bounds = array<i64: 1, 32>}, {transform_indices = @transform_3, window_bounds = array<i64: 8, 32>}]} {
    %c0 = arith.constant 0 : index
    %c0_0 = arith.constant 0 : index
    %0 = vector.load %arg1[%c0, %c0_0] : memref<8x192xbf16, #tpu.memory_space<vmem>>, vector<8x192xbf16>
    %c0_1 = arith.constant 0 : index
    %c0_2 = arith.constant 0 : index
    %1 = vector.load %arg2[%c0_1, %c0_2] : memref<192x32xbf16, #tpu.memory_space<vmem>>, vector<192x32xbf16>
    %cst = arith.constant dense<0.000000e+00> : vector<8x32xf32>
    %2 = tpu.matmul %0, %1, %cst {dimension_numbers = #tpu.dot_dimension_numbers<[1], [0], [0], [1], [0, 0, 1, 1], [], []>} : vector<8x192xbf16>, vector<192x32xbf16>, vector<8x32xf32> -> vector<8x32xf32>
    %c0_3 = arith.constant 0 : index
    %c0_4 = arith.constant 0 : index
    %3 = vector.load %arg3[%c0_3, %c0_4] : memref<1x32xf32, #tpu.memory_space<vmem>>, vector<1x32xf32>
    %4 = vector.broadcast %3 : vector<1x32xf32> to vector<8x32xf32>
    %5 = arith.addf %2, %4 : vector<8x32xf32>
    %6 = arith.truncf %5 : vector<8x32xf32> to vector<8x32xbf16>
    %c0_5 = arith.constant 0 : index
    %c0_6 = arith.constant 0 : index
    %7 = vector.load %arg4[%c0_5, %c0_6] : memref<8x32xbf16, #tpu.memory_space<vmem>>, vector<8x32xbf16>
    tpu.vector_store %arg4[%c0_5, %c0_6], %6 {strides = array<i32>} : memref<8x32xbf16, #tpu.memory_space<vmem>>, vector<8x32xbf16>,
    return
  }
  func.func @transform_0(%arg0: i32) -> (i32, i32) {
    %c0_i32 = arith.constant 0 : i32
    %c0_i32_0 = arith.constant 0 : i32
    return %arg0, %c0_i32 : i32, i32
  }
  func.func @transform_1(%arg0: i32) -> (i32, i32) {
    %c0_i32 = arith.constant 0 : i32
    %c0_i32_0 = arith.constant 0 : i32
    %c0_i32_1 = arith.constant 0 : i32
    return %c0_i32, %c0_i32_0 : i32, i32
  }
  func.func @transform_2(%arg0: i32) -> (i32, i32) {
    %c0_i32 = arith.constant 0 : i32
    %c0_i32_0 = arith.constant 0 : i32
    %c0_i32_1 = arith.constant 0 : i32
    return %c0_i32, %c0_i32_0 : i32, i32
  }
  func.func @transform_3(%arg0: i32) -> (i32, i32) {
    %c0_i32 = arith.constant 0 : i32
    %c0_i32_0 = arith.constant 0 : i32
    return %arg0, %c0_i32 : i32, i32
  }
}

</mosaic_0001>

<llo_original>
// kernel: tpu_custom_call.1
$region0: #{tpu_custom_call.1}
  #allocation0 [shape = 'u32[]', space=smem, size = 0x4, offset = 0x4, fixed_abs, tag = 'smem constant byte address 0x4 - core index']
  #allocation1 [shape = 'u32[72,128]{1,0:T(1,128)}', space=vmem, size = 0x9000, scoped, tag = 'internal scratch']
  %s0 = inlined_call_operand.vmem [shape: bf16[16,192], index: 0, kind: input, shape index: {}]
  %s1 = inlined_call_operand.vmem [shape: bf16[192,32], index: 1, kind: input, shape index: {}]
  %s2 = inlined_call_operand.vmem [shape: f32[1,32], index: 2, kind: input, shape index: {}]
  %s3 = inlined_call_operand.hbm [shape: bf16[16,32], index: 3, kind: output, shape index: {}]
  %s4 = sld [smem:[#allocation0]]
  $region45: #{tpu_custom_call.1} parent=0
    _
  %s6 = ssub.s32 1, %s4
  %s7 = scalar_select 0, %s6, %s4
  $region1: #{tpu_custom_call.1} parent=0
    #allocation2 [shape = 'u8[4096]{0}', space=vmem, size = 0x1000, scoped, tag = 'output window, operand 0']
    #allocation3 [shape = 's32[2]{0}', space=sflag, size = 0x8, scoped, tag = 'scoped memory for tpu_custom_call.1']
    %8 = vsyncpa [#allocation3], 0
    %s9 = scalar_lea.sflag [#allocation3], 1
    %10 = vsyncpa %s9, 0
    loop: start=0, step=1, limit=4
    $region2: #{tpu_custom_call.1} parent=1 // loop_pre_header
      _
    $region3: #{tpu_custom_call.1} parent=1 // loop_header
      %s12 = sphi 0, %s16
      %p13 = scmp.ge.s32.totalorder %s12, 4
      %s22 = sphi 0, %s24
      %s25 = sphi 0, %s22
      %s26 = sphi 0, %s25
      %s42 = sphi 0, %s26
      %s46 = sphi 0, %s46
      %s48 = sphi 0, %s46
      %s49 = sphi 0, %s48
      %s63 = sphi 0, %s49
      %s67 = sphi 0, %s67
      %s69 = sphi 0, %s67
      %s70 = sphi 0, %s69
      %s84 = sphi 0, %s70
      %s90 = sphi 0, %s92
      %s93 = sphi 0, %s90
      %s94 = sphi 0, %s93
      %s110 = sphi 0, %s94
    $region4: #{tpu_custom_call.1} parent=1 // loop_header_branch
      %15 = sbr.rel (%p13) target = $region8
    $region5: #{tpu_custom_call.1} parent=1 // loop_body
      %s17 = ssub.s32 %s12, 1
      %s18 = ssub.s32 %s12, 2
      %s19 = sadd.s32 %s12, 1
      %s20 = ssub.s32 %s12, %s19
      %p21 = scmp.eq.s32.totalorder %s20, 0
      %s23 = sadd.s32 %s22, 1
      %s24 = scalar_select %p21, %s22, %s23
      %p27 = pneg %p21
      %p28 = scmp.eq.s32.totalorder %s12, 1
      %p29 = por %p27, %p28
      %p30 = scmp.ne.s32.totalorder %s22, %s25
      %p31 = scmp.eq.s32.totalorder %s12, 0
      %p32 = por %p30, %p31
      %p33 = scmp.ne.s32.totalorder %s22, %s25
      %p34 = scmp.eq.s32.totalorder %s17, 1
      %p35 = por %p33, %p34
      %p36 = scmp.ne.s32.totalorder %s25, %s26
      %p37 = scmp.eq.s32.totalorder %s17, 0
      %p38 = por %p36, %p37
      %p39 = scmp.ne.s32.totalorder %s25, %s26
      %p40 = scmp.eq.s32.totalorder %s18, 1
      %p41 = por %p39, %p40
      %p43 = scmp.ne.s32.totalorder %s26, %s42
      %p44 = scmp.eq.s32.totalorder %s18, 0
      %p45 = por %p43, %p44
      %s47 = sadd.s32 %s46, 1
      %p50 = scmp.eq.s32.totalorder %s12, 1
      %p51 = scmp.ne.s32.totalorder %s46, %s48
      %p52 = scmp.eq.s32.totalorder %s12, 0
      %p53 = por %p51, %p52
      %p54 = scmp.ne.s32.totalorder %s46, %s48
      %p55 = scmp.eq.s32.totalorder %s17, 1
      %p56 = por %p54, %p55
      %p57 = scmp.ne.s32.totalorder %s48, %s49
      %p58 = scmp.eq.s32.totalorder %s17, 0
      %p59 = por %p57, %p58
      %p60 = scmp.ne.s32.totalorder %s48, %s49
      %p61 = scmp.eq.s32.totalorder %s18, 1
      %p62 = por %p60, %p61
      %p64 = scmp.ne.s32.totalorder %s49, %s63
      %p65 = scmp.eq.s32.totalorder %s18, 0
      %p66 = por %p64, %p65
      %s68 = sadd.s32 %s67, 1
      %p71 = scmp.eq.s32.totalorder %s12, 1
      %p72 = scmp.ne.s32.totalorder %s67, %s69
      %p73 = scmp.eq.s32.totalorder %s12, 0
      %p74 = por %p72, %p73
      %p75 = scmp.ne.s32.totalorder %s67, %s69
      %p76 = scmp.eq.s32.totalorder %s17, 1
      %p77 = por %p75, %p76
      %p78 = scmp.ne.s32.totalorder %s69, %s70
      %p79 = scmp.eq.s32.totalorder %s17, 0
      %p80 = por %p78, %p79
      %p81 = scmp.ne.s32.totalorder %s69, %s70
      %p82 = scmp.eq.s32.totalorder %s18, 1
      %p83 = por %p81, %p82
      %p85 = scmp.ne.s32.totalorder %s70, %s84
      %p86 = scmp.eq.s32.totalorder %s18, 0
      %p87 = por %p85, %p86
      %s88 = ssub.s32 %s12, %s19
      %p89 = scmp.eq.s32.totalorder %s88, 0
      %s91 = sadd.s32 %s90, 1
      %s92 = scalar_select %p89, %s90, %s91
      %p95 = pneg %p89
      %p96 = scmp.eq.s32.totalorder %s12, 1
      %p97 = por %p95, %p96
      %p98 = scmp.ne.s32.totalorder %s90, %s93
      %p99 = scmp.eq.s32.totalorder %s12, 0
      %p100 = por %p98, %p99
      %p101 = scmp.ne.s32.totalorder %s90, %s93
      %p102 = scmp.eq.s32.totalorder %s17, 1
      %p103 = por %p101, %p102
      %p104 = scmp.ne.s32.totalorder %s93, %s94
      %p105 = scmp.eq.s32.totalorder %s17, 0
      %p106 = por %p104, %p105
      %p107 = scmp.ne.s32.totalorder %s93, %s94
      %p108 = scmp.eq.s32.totalorder %s18, 1
      %p109 = por %p107, %p108
      %p111 = scmp.ne.s32.totalorder %s94, %s110
      %p112 = scmp.eq.s32.totalorder %s18, 0
      %p113 = por %p111, %p112
      %p114 = scmp.le.s32.totalorder 1, %s12
      %p115 = scmp.lt.s32.totalorder %s12, 3
      %p116 = pnand %p114, %p115
      %p117 = pneg %p116
      // Predicated region
      $region9: #{tpu_custom_call.1} parent=5 // pred_check
        _
      $region10: #{tpu_custom_call.1} parent=5 // pred_check_branch
        %119 = sbr.rel (%p116) target = $region12
      $region11: #{tpu_custom_call.1} parent=5 // pred_region
        %s120 = ssub.s32 %s12, 1
        // Predicated region
        $region13: #{tpu_custom_call.1} parent=11 // pred_check
          %p121 = pneg %p59
        $region14: #{tpu_custom_call.1} parent=11 // pred_check_branch
          %123 = sbr.rel (%p121) target = $region16
        $region15: #{tpu_custom_call.1} parent=11 // pred_region
          _
        $region16: #{tpu_custom_call.1} parent=11 // pred_fallthru
          _
        // Predicated region
        $region17: #{tpu_custom_call.1} parent=11 // pred_check
          %p124 = pneg %p80
        $region18: #{tpu_custom_call.1} parent=11 // pred_check_branch
          %126 = sbr.rel (%p124) target = $region20
        $region19: #{tpu_custom_call.1} parent=11 // pred_region
          _
        $region20: #{tpu_custom_call.1} parent=11 // pred_fallthru
          _
      $region12: #{tpu_custom_call.1} parent=5 // pred_fallthru
        _
      %p127 = scmp.lt.s32.totalorder %s12, 2
      // Predicated region
      $region21: #{tpu_custom_call.1} parent=5 // pred_check
        %p128 = pneg %p127
      $region22: #{tpu_custom_call.1} parent=5 // pred_check_branch
        %130 = sbr.rel (%p128) target = $region24
      $region23: #{tpu_custom_call.1} parent=5 // pred_region
        // Predicated region
        $region25: #{tpu_custom_call.1} parent=23 // pred_check
          %p131 = pneg %p32
        $region26: #{tpu_custom_call.1} parent=23 // pred_check_branch
          %133 = sbr.rel (%p131) target = $region28
        $region27: #{tpu_custom_call.1} parent=23 // pred_region
          %p134 = scmp.lt.s32.totalorder %s12, 1
          %s135 = scalar_select %p134, %s12, 1
          %s136 = smul.addr %s135, 2
          %s137 = smul.addr %s136, 4
          %s138 = scalar_lea.vmem %s0, %s137
        $region28: #{tpu_custom_call.1} parent=23 // pred_fallthru
          _
      $region24: #{tpu_custom_call.1} parent=5 // pred_fallthru
        _
      %p139 = scmp.le.s32.totalorder 1, %s12
      %p140 = scmp.lt.s32.totalorder %s12, 3
      %p141 = pnand %p139, %p140
      %p142 = pneg %p141
      // Predicated region
      $region29: #{tpu_custom_call.1} parent=5 // pred_check
        _
      $region30: #{tpu_custom_call.1} parent=5 // pred_check_branch
        %144 = sbr.rel (%p141) target = $region32
      $region31: #{tpu_custom_call.1} parent=5 // pred_region
        %s145 = ssub.s32 %s12, 1
        %p146 = scmp.lt.s32.totalorder %s17, 1
        %s147 = scalar_select %p146, %s17, 1
        %s148 = smul.addr %s147, 2
        %s149 = smul.addr %s148, 4
        %s150 = scalar_lea.vmem %s0, %s149
        %p151 = pneg %p38
        %p152 = pneg %p35
        %p153 = pneg %p59
        %p154 = pneg %p56
        %p155 = pneg %p80
        %p156 = pneg %p77
        %p157 = pneg %p106
        %p158 = pneg %p103
        %s159 = sand.u32 %s93, 1
        %s160 = scalar_lea.sflag [#allocation3], %s159
        %s161 = sand.u32 %s93, 1
        %s162 = smul.addr %s161, 4
        %s163 = scalar_lea.vmem [#allocation2], %s162
        %p164 = scmp.lt.s32.totalorder %s17, 1
        %s165 = scalar_select %p164, %s17, 1
        %s166 = smul.addr %s165, 2
        %s167 = smul.addr %s166, 4
        %s168 = scalar_lea.vmem %s0, %s167
        %v170 = vld [vmem:[%s168] sm:$0xff]
        %v171 = vld [vmem:[%s1] sm:$0xf]
        %v172 = vld [vmem:[%s1 + $0x4] sm:$0xf]
        %v173 = vld [vmem:[%s1 + $0x8] sm:$0xf]
        %v174 = vld [vmem:[%s1 + $0xc] sm:$0xf]
        %v175 = vld [vmem:[%s1 + $0x10] sm:$0xf]
        %v176 = vld [vmem:[%s1 + $0x14] sm:$0xf]
        %v177 = vld [vmem:[%s1 + $0x18] sm:$0xf]
        %v178 = vld [vmem:[%s1 + $0x1c] sm:$0xf]
        %v179 = vld [vmem:[%s1 + $0x20] sm:$0xf]
        %v180 = vld [vmem:[%s1 + $0x24] sm:$0xf]
        %v181 = vld [vmem:[%s1 + $0x28] sm:$0xf]
        %v182 = vld [vmem:[%s1 + $0x2c] sm:$0xf]
        %v183 = vld [vmem:[%s1 + $0x30] sm:$0xf]
        %v184 = vld [vmem:[%s1 + $0x34] sm:$0xf]
        %v185 = vld [vmem:[%s1 + $0x38] sm:$0xf]
        %v186 = vld [vmem:[%s1 + $0x3c] sm:$0xf]
        %v187 = vld [vmem:[%s1 + $0x40] sm:$0xf]
        %v188 = vld [vmem:[%s1 + $0x44] sm:$0xf]
        %v189 = vld [vmem:[%s1 + $0x48] sm:$0xf]
        %v190 = vld [vmem:[%s1 + $0x4c] sm:$0xf]
        %v191 = vld [vmem:[%s1 + $0x50] sm:$0xf]
        %v192 = vld [vmem:[%s1 + $0x54] sm:$0xf]
        %v193 = vld [vmem:[%s1 + $0x58] sm:$0xf]
        %v194 = vld [vmem:[%s1 + $0x5c] sm:$0xf]
        %v195 = vld [vmem:[%s2] sm:$0x1]
        %v197 = vperm.slane %v195, 0
        %v200 = vunpack.c.l.b16 %v170
        %v201 = vunpack.c.h.b16 %v170
        %v202 = vpack.c.b16 %v200, %v200
        %v203 = vpack.c.b16 %v201, %v201
        %v229 = vunpack.c.l.b16 %v171
        %v230 = vunpack.c.l.b16 %v172
        %v231 = vunpack.c.l.b16 %v173
        %v232 = vunpack.c.l.b16 %v174
        %v233 = vunpack.c.l.b16 %v175
        %v234 = vunpack.c.l.b16 %v176
        %v235 = vunpack.c.l.b16 %v177
        %v236 = vunpack.c.l.b16 %v178
        %v237 = vunpack.c.l.b16 %v179
        %v238 = vunpack.c.l.b16 %v180
        %v239 = vunpack.c.l.b16 %v181
        %v240 = vunpack.c.l.b16 %v182
        %v241 = vunpack.c.l.b16 %v183
        %v242 = vunpack.c.l.b16 %v184
        %v243 = vunpack.c.l.b16 %v185
        %v244 = vunpack.c.l.b16 %v186
        %v245 = vunpack.c.l.b16 %v187
        %v246 = vunpack.c.l.b16 %v188
        %v247 = vunpack.c.l.b16 %v189
        %v248 = vunpack.c.l.b16 %v190
        %v249 = vunpack.c.l.b16 %v191
        %v250 = vunpack.c.l.b16 %v192
        %v251 = vunpack.c.l.b16 %v193
        %v252 = vunpack.c.l.b16 %v194
        %v253 = vpack.c.b16 %v230, %v229
        %v254 = vpack.c.b16 %v232, %v231
        %v255 = vpack.c.b16 %v234, %v233
        %v256 = vpack.c.b16 %v236, %v235
        %v257 = vpack.c.b16 %v238, %v237
        %v258 = vpack.c.b16 %v240, %v239
        %v259 = vpack.c.b16 %v242, %v241
        %v260 = vpack.c.b16 %v244, %v243
        %v261 = vpack.c.b16 %v246, %v245
        %v262 = vpack.c.b16 %v248, %v247
        %v263 = vpack.c.b16 %v250, %v249
        %v264 = vpack.c.b16 %v252, %v251
        %vm277 = vcmask 523264
        %v279 = vsel %vm277, %v203, 0
        %281 = vmatpush.bf16.msra.mxu0 %v260
        %282 = vmatpush.bf16.msra.mxu0 %v259
        %283 = vmatpush.bf16.msra.mxu0 %v258
        %284 = vmatpush.bf16.msra.mxu0 %v257
        %285 = vmatpush.bf16.msra.mxu0 %v256
        %286 = vmatpush.bf16.msra.mxu0 %v255
        %287 = vmatpush.bf16.msra.mxu0 %v254
        %288 = vmatpush.bf16.msra.mxu0 %v253
        %289 = vmatmul.bf16.gmra.mxu0 %v202
        %v290 = vpop.f32.mrf.mxu0
        %v291 = vadd.f32 %v197, %v290
        %v292 = vpop.f32.mrf.mxu0
        %293 = vdwg.mxu0
        %294 = vmatpush.bf16.msra.mxu0 0
        %295 = vmatpush.bf16.msra.mxu0 0
        %296 = vmatpush.bf16.msra.mxu0 0
        %297 = vmatpush.bf16.msra.mxu0 0
        %298 = vmatpush.bf16.msra.mxu0 %v264
        %299 = vmatpush.bf16.msra.mxu0 %v263
        %300 = vmatpush.bf16.msra.mxu0 %v262
        %301 = vmatpush.bf16.msra.mxu0 %v261
        %302 = vmatmul.bf16.gmra.mxu0 %v279
        %v303 = vpop.f32.mrf.mxu0
        %v304 = vadd.f32 %v291, %v303
        %v305 = vpop.f32.mrf.mxu0
        %306 = vdwg.mxu0
        %v307 = vpack.c.bf16 %v304, %v304
        %vm308 = vcmask 257024
        %309 = vst.msk [vmem:[%s163] sm:$0xf] %vm308, %v307
        %s310 = sand.u32 %s93, 1
        %s311 = scalar_lea.sflag [#allocation3], %s310
        %s312 = sand.u32 %s93, 1
        %s313 = smul.addr %s312, 4
        %s314 = scalar_lea.vmem [#allocation2], %s313
        // Predicated region
        $region33: #{tpu_custom_call.1} parent=31 // pred_check
          %p315 = pneg %p103
        $region34: #{tpu_custom_call.1} parent=31 // pred_check_branch
          %317 = sbr.rel (%p315) target = $region36
        $region35: #{tpu_custom_call.1} parent=31 // pred_region
          %319 = vsyncadd %s311, 0
          %s320 = smul.addr %s17, 4
          %s321 = scalar_lea.hbm %s3, %s320
          %s323 = sshll.u32 %s314, 4
          %s324 = int_to_ptr.vmem [resolvable:$true] %s323
          %s325 = sshll.u32 %s321, 4
          %s326 = int_to_ptr.hbm [resolvable:$true] %s325
          %328 = dma.vmem_to_hbm [thread:$0]  %s324, 64, %s326, %s311
        $region36: #{tpu_custom_call.1} parent=31 // pred_fallthru
          _
      $region32: #{tpu_custom_call.1} parent=5 // pred_fallthru
        _
      %p329 = scmp.le.s32.totalorder 2, %s12
      // Predicated region
      $region37: #{tpu_custom_call.1} parent=5 // pred_check
        %p330 = pneg %p329
      $region38: #{tpu_custom_call.1} parent=5 // pred_check_branch
        %332 = sbr.rel (%p330) target = $region40
      $region39: #{tpu_custom_call.1} parent=5 // pred_region
        %s333 = ssub.s32 %s12, 2
        // Predicated region
        $region41: #{tpu_custom_call.1} parent=39 // pred_check
          %p334 = pneg %p109
        $region42: #{tpu_custom_call.1} parent=39 // pred_check_branch
          %336 = sbr.rel (%p334) target = $region44
        $region43: #{tpu_custom_call.1} parent=39 // pred_region
          %s337 = sand.u32 %s94, 1
          %s338 = scalar_lea.sflag [#allocation3], %s337
          %s339 = sand.u32 %s94, 1
          %s340 = smul.addr %s339, 4
          %s341 = scalar_lea.vmem [#allocation2], %s340
          %343 = dma.done %s338, 64
        $region44: #{tpu_custom_call.1} parent=39 // pred_fallthru
          _
      $region40: #{tpu_custom_call.1} parent=5 // pred_fallthru
        _
    $region6: #{tpu_custom_call.1} parent=1 // loop_footer
      %s16 = sadd.s32 1, %s12
    $region7: #{tpu_custom_call.1} parent=1 // loop_footer_branch
      %11 = sbr.rel target = $region3
    $region8: #{tpu_custom_call.1} parent=1 // loop_exit
      _
    %344 = vsyncpa [#allocation3], 1
    %s345 = scalar_lea.sflag [#allocation3], 1
    %346 = vsyncpa %s345, 1

</llo_original>
